<compile_context>
chip_gen: v7x
topology: tpu7x:2x2x1
jax: 0.10.0
libtpu: 0.0.40
codegen_flags: <defaults>
</compile_context>

<pallas_src>
import functools
import math

import jax
import jax.numpy as jnp
import numpy as np
from jax.experimental import pallas as pl
from jax.experimental.pallas import tpu as pltpu

# ---------------- configuration (mirrors args used in MainNet.__init__) -------
IMAGE_SIZE = 16
IMAGE_CHANNEL = 1
NUM_CONCEPT = 2
CONCEPT_SIZE = 8
TOTAL_SIZE = NUM_CONCEPT * CONCEPT_SIZE          # concept_size * num_concept
NUM_NODE = 4                                     # n = number of panels per sample
HIDDEN = 32
Z_SIGMA = 0.1                                    # dist.Normal(std_fix=z_sigma)
BS = 2

IMG_FLAT = IMAGE_CHANNEL * IMAGE_SIZE * IMAGE_SIZE   # 256
LOG_2PI = math.log(2.0 * math.pi)
LOSS_LANES = 128                                 # lane-dense loss output width


# --------------------------- fused Pallas kernel --------------------------------
def _fused_forward_kernel(
    # inputs
    p_ref, eps_ref,
    enc_w1_ref, enc_b1_ref, enc_w2_ref, enc_b2_ref,
    dec_w1_ref, dec_b1_ref, dec_w2_ref, dec_b2_ref,
    pred_w_ref, pred_b_ref,
    # outputs
    z_ref, mu_ref, ztprior_ref, xparam_ref, losses_ref,
    *, bs, n, mask_idx):
  """Entire MainNet.forward hot path; everything resident in VMEM, no grid."""
  f32 = jnp.float32

  # ---- encoder (all bs*n panels, node-major rows: row = node*bs + b) ----
  x = p_ref[...]                                                   # (n*bs, IMG_FLAT)
  h = jnp.dot(x, enc_w1_ref[...], preferred_element_type=f32) + enc_b1_ref[...]
  h = jnp.maximum(h, 0.0)
  mu = jnp.dot(h, enc_w2_ref[...], preferred_element_type=f32) + enc_b2_ref[...]
  z = mu + Z_SIGMA * eps_ref[...]                                  # reparameterized sample
  mu_ref[...] = mu
  z_ref[...] = z

  # ---- predictor: concat(context nodes) @ pred_w  ==  sum_j z_nodej @ W_blockj ----
  pred_w = pred_w_ref[...]                                         # ((n-1)*TS, TS)
  acc = jnp.zeros((bs, TOTAL_SIZE), f32)
  col = 0
  for j in range(n):                                               # static, unrolled
    if j == mask_idx:
      continue
    zj = z[j * bs:(j + 1) * bs, :]                                 # (bs, TS) node j
    wj = pred_w[col * TOTAL_SIZE:(col + 1) * TOTAL_SIZE, :]        # (TS, TS)
    acc = acc + jnp.dot(zj, wj, preferred_element_type=f32)
    col += 1
  zt_prior_mu = acc + pred_b_ref[...]
  ztprior_ref[...] = zt_prior_mu

  # ---- decoder on the masked node ----
  zt = z[mask_idx * bs:(mask_idx + 1) * bs, :]                     # (bs, TS)
  h2 = jnp.dot(zt, dec_w1_ref[...], preferred_element_type=f32) + dec_b1_ref[...]
  h2 = jnp.maximum(h2, 0.0)
  xparam = jnp.dot(h2, dec_w2_ref[...], preferred_element_type=f32) + dec_b2_ref[...]
  xparam_ref[...] = xparam                                         # (bs, 2*IMG_FLAT) = [mean | logvar]
  mean = xparam[:, :IMG_FLAT]
  logvar = xparam[:, IMG_FLAT:]

  # ---- losses (per-sample), all in f32 on the VPU/EUP ----
  gt = x[mask_idx * bs:(mask_idx + 1) * bs, :]                     # masked-node pixels (bs, IMG_FLAT)
  nll = 0.5 * (logvar + (gt - mean) ** 2 * jnp.exp(-logvar) + LOG_2PI)
  recon = jnp.sum(nll, axis=-1, keepdims=True)                     # (bs, 1)

  mu_t = mu[mask_idx * bs:(mask_idx + 1) * bs, :]                  # posterior mu of masked node
  var = Z_SIGMA * Z_SIGMA
  kl_const = 0.5 * TOTAL_SIZE * (var - 1.0 - math.log(var))        # compile-time constant
  kl = 0.5 * jnp.sum(mu_t * mu_t, axis=-1, keepdims=True) + kl_const

  d = zt - zt_prior_mu
  pred = jnp.sum(d * d, axis=-1, keepdims=True)                    # (bs, 1)

  # lane-dense packed loss output: lane 0 = recon, 1 = kl, 2 = pred, rest 0
  lane = jax.lax.broadcasted_iota(jnp.int32, (bs, LOSS_LANES), 1)
  losses = jnp.where(lane == 0, recon,
            jnp.where(lane == 1, kl,
             jnp.where(lane == 2, pred, 0.0)))
  losses_ref[...] = losses


def _run_fused(params, p_nm, eps_nm, bs, n, mask_idx):
  kernel = functools.partial(_fused_forward_kernel, bs=bs, n=n, mask_idx=mask_idx)
  out_shape = (
      jax.ShapeDtypeStruct((n * bs, TOTAL_SIZE), jnp.float32),     # z   (node-major)
      jax.ShapeDtypeStruct((n * bs, TOTAL_SIZE), jnp.float32),     # mu  (node-major)
      jax.ShapeDtypeStruct((bs, TOTAL_SIZE), jnp.float32),         # zt_prior mean
      jax.ShapeDtypeStruct((bs, 2 * IMG_FLAT), jnp.float32),       # x_param [mean|logvar]
      jax.ShapeDtypeStruct((bs, LOSS_LANES), jnp.float32),         # packed losses
  )
  vmem = pl.BlockSpec(memory_space=pltpu.MemorySpace.VMEM)
  return pl.pallas_call(
      kernel,
      out_shape=out_shape,
      in_specs=[vmem] * 12,
      out_specs=(vmem,) * 5,
  )(p_nm, eps_nm,
    params["enc_w1"], params["enc_b1"], params["enc_w2"], params["enc_b2"],
    params["dec_w1"], params["dec_b1"], params["dec_w2"], params["dec_b2"],
    params["pred_w"], params["pred_b"])


# ---------------------------- parameters ----------------------------------------
def init_params(key):
  ks = jax.random.split(key, 5)

  def w(k, shape, scale=0.05):
    return jax.random.normal(k, shape, jnp.float32) * scale

  return {
      # encoder (AutoEncoder.encode)
      "enc_w1": w(ks[0], (IMG_FLAT, HIDDEN)),
      "enc_b1": jnp.zeros((1, HIDDEN), jnp.float32),
      "enc_w2": w(ks[1], (HIDDEN, TOTAL_SIZE)),
      "enc_b2": jnp.zeros((1, TOTAL_SIZE), jnp.float32),
      # decoder (AutoEncoder.decode) -> [pixel means | pixel logvars]
      "dec_w1": w(ks[2], (TOTAL_SIZE, HIDDEN)),
      "dec_b1": jnp.zeros((1, HIDDEN), jnp.float32),
      "dec_w2": w(ks[3], (HIDDEN, 2 * IMG_FLAT)),
      "dec_b2": jnp.zeros((1, 2 * IMG_FLAT), jnp.float32),
      # predictor (context nodes -> masked node latent mean)
      "pred_w": w(ks[4], ((NUM_NODE - 1) * TOTAL_SIZE, TOTAL_SIZE)),
      "pred_b": jnp.zeros((1, TOTAL_SIZE), jnp.float32),
  }


# ------------------------------ forward -----------------------------------------
def forward(params, p, eps):
  """MainNet.forward:  p -> (elbo, logger, loss_dicts). One Pallas kernel."""
  bs, n = p.shape[0], p.shape[1]
  # TODO(synk): PyTorch selects the masked node via host-side random.shuffle;
  #             fixed deterministically to node 0 here (as before).
  mask_idx = 0

  # node-major layout so masked/context slices are contiguous inside the kernel
  p_nm = jnp.transpose(p, (1, 0, 2, 3, 4)).reshape(n * bs, IMG_FLAT)
  eps_nm = jnp.transpose(eps, (1, 0, 2)).reshape(n * bs, TOTAL_SIZE)

  z_nm, mu_nm, zt_prior_mu, x_param_flat, losses = _run_fused(
      params, p_nm, eps_nm, bs, n, mask_idx)

  # ---- output plumbing (pure XLA, after the single kernel) ----
  z = z_nm.reshape(n, bs, NUM_CONCEPT, CONCEPT_SIZE).transpose(1, 0, 2, 3)
  mu4 = mu_nm.reshape(n, bs, NUM_CONCEPT, CONCEPT_SIZE).transpose(1, 0, 2, 3)
  sg4 = jnp.full_like(mu4, Z_SIGMA)
  z_post = jnp.stack([mu4, sg4], axis=-1)                          # (bs,n,nc,cs,2)
  zt = z[:, mask_idx:mask_idx + 1]
  zt_post = z_post[:, mask_idx:mask_idx + 1]

  zt_mu4 = zt_prior_mu.reshape(bs, 1, NUM_CONCEPT, CONCEPT_SIZE)
  zt_prior = jnp.stack([zt_mu4, jnp.full_like(zt_mu4, Z_SIGMA)], axis=-1)

  mean = x_param_flat[:, :IMG_FLAT].reshape(bs, 1, IMAGE_CHANNEL, IMAGE_SIZE, IMAGE_SIZE)
  logvar = x_param_flat[:, IMG_FLAT:].reshape(bs, 1, IMAGE_CHANNEL, IMAGE_SIZE, IMAGE_SIZE)
  x_param = jnp.stack([mean, logvar], axis=-1)                     # (bs,1,C,H,W,2)
  x_mean = mean.reshape(bs, IMAGE_CHANNEL, IMAGE_SIZE, IMAGE_SIZE)

  pt = p[:, mask_idx:mask_idx + 1]                                 # split_by_mask(p, mask, 1)

  recon = losses[:, 0]
  kl = losses[:, 1]
  pred = losses[:, 2]
  recon_m = jnp.mean(recon)
  kl_m = jnp.mean(kl)
  pred_m = jnp.mean(pred)
  # TODO(synk): called 'elbo' to match the reference interface; it is a loss
  #             (mean NLL + KL + latent prediction error), same as previous version.
  elbo = recon_m + kl_m + pred_m

  logger = {"recon": recon_m, "kl": kl_m, "pred": pred_m, "elbo": elbo}
  loss_dicts = {
      "z": z, "z_post": z_post,
      "zt": zt, "zt_post": zt_post,
      "zt_prior": zt_prior,
      "x_param": x_param, "x_mean": x_mean,
      "gt": pt,
  }
  return elbo, logger, loss_dicts


# --------------------- pure-JAX reference (for validation) ----------------------
def _reference_forward(params, p, eps, mask_idx=0):
  hp = jax.lax.Precision.HIGHEST
  bs, n = p.shape[0], p.shape[1]
  x = p.reshape(bs * n, IMG_FLAT)
  h = jnp.maximum(jnp.dot(x, params["enc_w1"], precision=hp) + params["enc_b1"], 0.0)
  mu = jnp.dot(h, params["enc_w2"], precision=hp) + params["enc_b2"]
  z = mu + Z_SIGMA * eps.reshape(bs * n, TOTAL_SIZE)
  zf = z.reshape(bs, n, TOTAL_SIZE)
  ctx = jnp.concatenate([zf[:, :mask_idx], zf[:, mask_idx + 1:]], axis=1)
  ctx = ctx.reshape(bs, (n - 1) * TOTAL_SIZE)
  zt_prior_mu = jnp.dot(ctx, params["pred_w"], precision=hp) + params["pred_b"]
  zt = zf[:, mask_idx]
  h2 = jnp.maximum(jnp.dot(zt, params["dec_w1"], precision=hp) + params["dec_b1"], 0.0)
  xparam = jnp.dot(h2, params["dec_w2"], precision=hp) + params["dec_b2"]
  mean, logvar = xparam[:, :IMG_FLAT], xparam[:, IMG_FLAT:]
  gt = p[:, mask_idx].reshape(bs, IMG_FLAT)
  recon = jnp.sum(0.5 * (logvar + (gt - mean) ** 2 * jnp.exp(-logvar) + LOG_2PI), axis=-1)
  mu_t = mu.reshape(bs, n, TOTAL_SIZE)[:, mask_idx]
  var = Z_SIGMA * Z_SIGMA
  kl = jnp.sum(0.5 * (var + mu_t ** 2 - 1.0 - math.log(var)), axis=-1)
  pred = jnp.sum((zt - zt_prior_mu) ** 2, axis=-1)
  return jnp.mean(recon + kl + pred), jnp.mean(recon), jnp.mean(kl), jnp.mean(pred)


# ------------------------------- driver ------------------------------------------
if __name__ == "__main__":
  key = jax.random.PRNGKey(0)
  kp, kx, ke = jax.random.split(key, 3)

  params = init_params(kp)
  p = jax.random.normal(
      kx, (BS, NUM_NODE, IMAGE_CHANNEL, IMAGE_SIZE, IMAGE_SIZE), jnp.float32)
  eps = jax.random.normal(ke, (BS, NUM_NODE, TOTAL_SIZE), jnp.float32)

  elbo, logger, loss_dicts = jax.jit(forward)(params, p, eps)
  jax.block_until_ready(elbo)

  # lightweight correctness check against a pure-JAX reference
  e_ref, r_ref, k_ref, pr_ref = _reference_forward(params, p, eps)
  np.testing.assert_allclose(float(elbo), float(e_ref), rtol=1e-2, atol=1e-2)
  np.testing.assert_allclose(float(logger["recon"]), float(r_ref), rtol=1e-2, atol=1e-2)
  np.testing.assert_allclose(float(logger["kl"]), float(k_ref), rtol=1e-2, atol=1e-2)
  np.testing.assert_allclose(float(logger["pred"]), float(pr_ref), rtol=1e-2, atol=1e-2)

  print("KERNEL_OK")
</pallas_src>

<mosaic_0001>
module attributes {stable_mosaic.version = 11 : i64} {
  func.func @_fused_forward_kernel(%arg0: memref<8x256xf32, #tpu.memory_space<vmem>>, %arg1: memref<8x16xf32, #tpu.memory_space<vmem>>, %arg2: memref<256x32xf32, #tpu.memory_space<vmem>>, %arg3: memref<1x32xf32, #tpu.memory_space<vmem>>, %arg4: memref<32x16xf32, #tpu.memory_space<vmem>>, %arg5: memref<1x16xf32, #tpu.memory_space<vmem>>, %arg6: memref<16x32xf32, #tpu.memory_space<vmem>>, %arg7: memref<1x32xf32, #tpu.memory_space<vmem>>, %arg8: memref<32x512xf32, #tpu.memory_space<vmem>>, %arg9: memref<1x512xf32, #tpu.memory_space<vmem>>, %arg10: memref<48x16xf32, #tpu.memory_space<vmem>>, %arg11: memref<1x16xf32, #tpu.memory_space<vmem>>, %arg12: memref<8x16xf32, #tpu.memory_space<vmem>>, %arg13: memref<8x16xf32, #tpu.memory_space<vmem>>, %arg14: memref<2x16xf32, #tpu.memory_space<vmem>>, %arg15: memref<2x512xf32, #tpu.memory_space<vmem>>, %arg16: memref<2x128xf32, #tpu.memory_space<vmem>>) attributes {dimension_semantics = [], scalar_prefetch = 0 : i64, scratch_operands = 0 : i64, tpu.core_type = #tpu.core_type<tc>} {
    %c0 = arith.constant 0 : index
    %c0_0 = arith.constant 0 : index
    %0 = vector.load %arg0[%c0, %c0_0] : memref<8x256xf32, #tpu.memory_space<vmem>>, vector<8x256xf32>
    %c0_1 = arith.constant 0 : index
    %c0_2 = arith.constant 0 : index
    %1 = vector.load %arg2[%c0_1, %c0_2] : memref<256x32xf32, #tpu.memory_space<vmem>>, vector<256x32xf32>
    %cst = arith.constant dense<0.000000e+00> : vector<8x32xf32>
    %2 = tpu.matmul %0, %1, %cst {dimension_numbers = #tpu.dot_dimension_numbers<[1], [0], [0], [1], [0, 0, 1, 1], [], []>} : vector<8x256xf32>, vector<256x32xf32>, vector<8x32xf32> -> vector<8x32xf32>
    %c0_3 = arith.constant 0 : index
    %c0_4 = arith.constant 0 : index
    %3 = vector.load %arg3[%c0_3, %c0_4] : memref<1x32xf32, #tpu.memory_space<vmem>>, vector<1x32xf32>
    %4 = vector.broadcast %3 : vector<1x32xf32> to vector<8x32xf32>
    %5 = arith.addf %2, %4 : vector<8x32xf32>
    %cst_5 = arith.constant 0.000000e+00 : f32
    %6 = vector.broadcast %cst_5 : f32 to vector<8x32xf32>
    %7 = arith.maximumf %5, %6 : vector<8x32xf32>
    %c0_6 = arith.constant 0 : index
    %c0_7 = arith.constant 0 : index
    %8 = vector.load %arg4[%c0_6, %c0_7] : memref<32x16xf32, #tpu.memory_space<vmem>>, vector<32x16xf32>
    %cst_8 = arith.constant dense<0.000000e+00> : vector<8x16xf32>
    %9 = tpu.matmul %7, %8, %cst_8 {dimension_numbers = #tpu.dot_dimension_numbers<[1], [0], [0], [1], [0, 0, 1, 1], [], []>} : vector<8x32xf32>, vector<32x16xf32>, vector<8x16xf32> -> vector<8x16xf32>
    %c0_9 = arith.constant 0 : index
    %c0_10 = arith.constant 0 : index
    %10 = vector.load %arg5[%c0_9, %c0_10] : memref<1x16xf32, #tpu.memory_space<vmem>>, vector<1x16xf32>
    %11 = vector.broadcast %10 : vector<1x16xf32> to vector<8x16xf32>
    %12 = arith.addf %9, %11 : vector<8x16xf32>
    %c0_11 = arith.constant 0 : index
    %c0_12 = arith.constant 0 : index
    %13 = vector.load %arg1[%c0_11, %c0_12] : memref<8x16xf32, #tpu.memory_space<vmem>>, vector<8x16xf32>
    %cst_13 = arith.constant 1.000000e-01 : f32
    %14 = vector.broadcast %cst_13 : f32 to vector<8x16xf32>
    %15 = arith.mulf %14, %13 : vector<8x16xf32>
    %16 = arith.addf %12, %15 : vector<8x16xf32>
    %c0_14 = arith.constant 0 : index
    %c0_15 = arith.constant 0 : index
    %17 = vector.load %arg13[%c0_14, %c0_15] : memref<8x16xf32, #tpu.memory_space<vmem>>, vector<8x16xf32>
    tpu.vector_store %arg13[%c0_14, %c0_15], %12 {strides = array<i32>} : memref<8x16xf32, #tpu.memory_space<vmem>>, vector<8x16xf32>,
    %c0_16 = arith.constant 0 : index
    %c0_17 = arith.constant 0 : index
    %18 = vector.load %arg12[%c0_16, %c0_17] : memref<8x16xf32, #tpu.memory_space<vmem>>, vector<8x16xf32>
    tpu.vector_store %arg12[%c0_16, %c0_17], %16 {strides = array<i32>} : memref<8x16xf32, #tpu.memory_space<vmem>>, vector<8x16xf32>,
    %c0_18 = arith.constant 0 : index
    %c0_19 = arith.constant 0 : index
    %19 = vector.load %arg10[%c0_18, %c0_19] : memref<48x16xf32, #tpu.memory_space<vmem>>, vector<48x16xf32>
    %cst_20 = arith.constant 0.000000e+00 : f32
    %20 = vector.broadcast %cst_20 : f32 to vector<2x16xf32>
    %21 = vector.extract_strided_slice %16 {offsets = [2, 0], sizes = [2, 16], strides = [1, 1]} : vector<8x16xf32> to vector<2x16xf32>
    %22 = vector.extract_strided_slice %19 {offsets = [0, 0], sizes = [16, 16], strides = [1, 1]} : vector<48x16xf32> to vector<16x16xf32>
    %cst_21 = arith.constant dense<0.000000e+00> : vector<2x16xf32>
    %23 = tpu.matmul %21, %22, %cst_21 {dimension_numbers = #tpu.dot_dimension_numbers<[1], [0], [0], [1], [0, 0, 1, 1], [], []>} : vector<2x16xf32>, vector<16x16xf32>, vector<2x16xf32> -> vector<2x16xf32>
    %24 = arith.addf %20, %23 : vector<2x16xf32>
    %25 = vector.extract_strided_slice %16 {offsets = [4, 0], sizes = [2, 16], strides = [1, 1]} : vector<8x16xf32> to vector<2x16xf32>
    %26 = vector.extract_strided_slice %19 {offsets = [16, 0], sizes = [16, 16], strides = [1, 1]} : vector<48x16xf32> to vector<16x16xf32>
    %cst_22 = arith.constant dense<0.000000e+00> : vector<2x16xf32>
    %27 = tpu.matmul %25, %26, %cst_22 {dimension_numbers = #tpu.dot_dimension_numbers<[1], [0], [0], [1], [0, 0, 1, 1], [], []>} : vector<2x16xf32>, vector<16x16xf32>, vector<2x16xf32> -> vector<2x16xf32>
    %28 = arith.addf %24, %27 : vector<2x16xf32>
    %29 = vector.extract_strided_slice %16 {offsets = [6, 0], sizes = [2, 16], strides = [1, 1]} : vector<8x16xf32> to vector<2x16xf32>
    %30 = vector.extract_strided_slice %19 {offsets = [32, 0], sizes = [16, 16], strides = [1, 1]} : vector<48x16xf32> to vector<16x16xf32>
    %cst_23 = arith.constant dense<0.000000e+00> : vector<2x16xf32>
    %31 = tpu.matmul %29, %30, %cst_23 {dimension_numbers = #tpu.dot_dimension_numbers<[1], [0], [0], [1], [0, 0, 1, 1], [], []>} : vector<2x16xf32>, vector<16x16xf32>, vector<2x16xf32> -> vector<2x16xf32>
    %32 = arith.addf %28, %31 : vector<2x16xf32>
    %c0_24 = arith.constant 0 : index
    %c0_25 = arith.constant 0 : index
    %33 = vector.load %arg11[%c0_24, %c0_25] : memref<1x16xf32, #tpu.memory_space<vmem>>, vector<1x16xf32>
    %34 = vector.broadcast %33 : vector<1x16xf32> to vector<2x16xf32>
    %35 = arith.addf %32, %34 : vector<2x16xf32>
    %c0_26 = arith.constant 0 : index
    %c0_27 = arith.constant 0 : index
    %36 = vector.load %arg14[%c0_26, %c0_27] : memref<2x16xf32, #tpu.memory_space<vmem>>, vector<2x16xf32>
    tpu.vector_store %arg14[%c0_26, %c0_27], %35 {strides = array<i32>} : memref<2x16xf32, #tpu.memory_space<vmem>>, vector<2x16xf32>,
    %37 = vector.extract_strided_slice %16 {offsets = [0, 0], sizes = [2, 16], strides = [1, 1]} : vector<8x16xf32> to vector<2x16xf32>
    %c0_28 = arith.constant 0 : index
    %c0_29 = arith.constant 0 : index
    %38 = vector.load %arg6[%c0_28, %c0_29] : memref<16x32xf32, #tpu.memory_space<vmem>>, vector<16x32xf32>
    %cst_30 = arith.constant dense<0.000000e+00> : vector<2x32xf32>
    %39 = tpu.matmul %37, %38, %cst_30 {dimension_numbers = #tpu.dot_dimension_numbers<[1], [0], [0], [1], [0, 0, 1, 1], [], []>} : vector<2x16xf32>, vector<16x32xf32>, vector<2x32xf32> -> vector<2x32xf32>
    %c0_31 = arith.constant 0 : index
    %c0_32 = arith.constant 0 : index
    %40 = vector.load %arg7[%c0_31, %c0_32] : memref<1x32xf32, #tpu.memory_space<vmem>>, vector<1x32xf32>
    %41 = vector.broadcast %40 : vector<1x32xf32> to vector<2x32xf32>
    %42 = arith.addf %39, %41 : vector<2x32xf32>
    %cst_33 = arith.constant 0.000000e+00 : f32
    %43 = vector.broadcast %cst_33 : f32 to vector<2x32xf32>
    %44 = arith.maximumf %42, %43 : vector<2x32xf32>
    %c0_34 = arith.constant 0 : index
    %c0_35 = arith.constant 0 : index
    %45 = vector.load %arg8[%c0_34, %c0_35] : memref<32x512xf32, #tpu.memory_space<vmem>>, vector<32x512xf32>
    %cst_36 = arith.constant dense<0.000000e+00> : vector<2x512xf32>
    %46 = tpu.matmul %44, %45, %cst_36 {dimension_numbers = #tpu.dot_dimension_numbers<[1], [0], [0], [1], [0, 0, 1, 1], [], []>} : vector<2x32xf32>, vector<32x512xf32>, vector<2x512xf32> -> vector<2x512xf32>
    %c0_37 = arith.constant 0 : index
    %c0_38 = arith.constant 0 : index
    %47 = vector.load %arg9[%c0_37, %c0_38] : memref<1x512xf32, #tpu.memory_space<vmem>>, vector<1x512xf32>
    %48 = vector.broadcast %47 : vector<1x512xf32> to vector<2x512xf32>
    %49 = arith.addf %46, %48 : vector<2x512xf32>
    %c0_39 = arith.constant 0 : index
    %c0_40 = arith.constant 0 : index
    %50 = vector.load %arg15[%c0_39, %c0_40] : memref<2x512xf32, #tpu.memory_space<vmem>>, vector<2x512xf32>
    tpu.vector_store %arg15[%c0_39, %c0_40], %49 {strides = array<i32>} : memref<2x512xf32, #tpu.memory_space<vmem>>, vector<2x512xf32>,
    %51 = vector.extract_strided_slice %49 {offsets = [0, 0], sizes = [2, 256], strides = [1, 1]} : vector<2x512xf32> to vector<2x256xf32>
    %52 = vector.extract_strided_slice %49 {offsets = [0, 256], sizes = [2, 256], strides = [1, 1]} : vector<2x512xf32> to vector<2x256xf32>
    %53 = vector.extract_strided_slice %0 {offsets = [0, 0], sizes = [2, 256], strides = [1, 1]} : vector<8x256xf32> to vector<2x256xf32>
    %54 = arith.subf %53, %51 : vector<2x256xf32>
    %55 = arith.mulf %54, %54 : vector<2x256xf32>
    %cst_41 = arith.constant 0.000000e+00 : f32
    %56 = vector.broadcast %cst_41 : f32 to vector<2x256xf32>
    %57 = arith.subf %56, %52 : vector<2x256xf32>
    %58 = math.exp %57 : vector<2x256xf32>
    %59 = arith.mulf %55, %58 : vector<2x256xf32>
    %60 = arith.addf %52, %59 : vector<2x256xf32>
    %cst_42 = arith.constant 1.83787704 : f32
    %61 = vector.broadcast %cst_42 : f32 to vector<2x256xf32>
    %62 = arith.addf %60, %61 : vector<2x256xf32>
    %cst_43 = arith.constant 5.000000e-01 : f32
    %63 = vector.broadcast %cst_43 : f32 to vector<2x256xf32>
    %64 = arith.mulf %63, %62 : vector<2x256xf32>
    %cst_44 = arith.constant dense<0.000000e+00> : vector<2xf32>
    %65 = vector.multi_reduction <add>, %64, %cst_44 [1] : vector<2x256xf32> to vector<2xf32>
    %66 = vector.shape_cast %65 : vector<2xf32> to vector<2x1xf32>
    %67 = vector.extract_strided_slice %12 {offsets = [0, 0], sizes = [2, 16], strides = [1, 1]} : vector<8x16xf32> to vector<2x16xf32>
    %68 = arith.mulf %67, %67 : vector<2x16xf32>
    %cst_45 = arith.constant dense<0.000000e+00> : vector<2xf32>
    %69 = vector.multi_reduction <add>, %68, %cst_45 [1] : vector<2x16xf32> to vector<2xf32>
    %70 = vector.shape_cast %69 : vector<2xf32> to vector<2x1xf32>
    %cst_46 = arith.constant 5.000000e-01 : f32
    %71 = vector.broadcast %cst_46 : f32 to vector<2x1xf32>
    %72 = arith.mulf %71, %70 : vector<2x1xf32>
    %cst_47 = arith.constant 28.9213619 : f32
    %73 = vector.broadcast %cst_47 : f32 to vector<2x1xf32>
    %74 = arith.addf %72, %73 : vector<2x1xf32>
    %75 = arith.subf %37, %35 : vector<2x16xf32>
    %76 = arith.mulf %75, %75 : vector<2x16xf32>
    %cst_48 = arith.constant dense<0.000000e+00> : vector<2xf32>
    %77 = vector.multi_reduction <add>, %76, %cst_48 [1] : vector<2x16xf32> to vector<2xf32>
    %78 = vector.shape_cast %77 : vector<2xf32> to vector<2x1xf32>
    %79 = tpu.iota {dimensions = array<i32: 1>} : vector<2x128xi32>
    %c0_i32 = arith.constant 0 : i32
    %80 = vector.broadcast %c0_i32 : i32 to vector<2x128xi32>
    %81 = arith.cmpi eq, %79, %80 : vector<2x128xi32>
    %c1_i32 = arith.constant 1 : i32
    %82 = vector.broadcast %c1_i32 : i32 to vector<2x128xi32>
    %83 = arith.cmpi eq, %79, %82 : vector<2x128xi32>
    %c2_i32 = arith.constant 2 : i32
    %84 = vector.broadcast %c2_i32 : i32 to vector<2x128xi32>
    %85 = arith.cmpi eq, %79, %84 : vector<2x128xi32>
    %cst_49 = arith.constant 0.000000e+00 : f32
    %86 = vector.shape_cast %78 : vector<2x1xf32> to vector<2x1xf32>
    %87 = vector.broadcast %86 : vector<2x1xf32> to vector<2x128xf32>
    %88 = vector.broadcast %cst_49 : f32 to vector<2x128xf32>
    %89 = arith.select %85, %87, %88 : vector<2x128xi1>, vector<2x128xf32>
    %90 = vector.shape_cast %74 : vector<2x1xf32> to vector<2x1xf32>
    %91 = vector.broadcast %90 : vector<2x1xf32> to vector<2x128xf32>
    %92 = arith.select %83, %91, %89 : vector<2x128xi1>, vector<2x128xf32>
    %93 = vector.shape_cast %66 : vector<2x1xf32> to vector<2x1xf32>
    %94 = vector.broadcast %93 : vector<2x1xf32> to vector<2x128xf32>
    %95 = arith.select %81, %94, %92 : vector<2x128xi1>, vector<2x128xf32>
    %c0_50 = arith.constant 0 : index
    %c0_51 = arith.constant 0 : index
    %96 = vector.load %arg16[%c0_50, %c0_51] : memref<2x128xf32, #tpu.memory_space<vmem>>, vector<2x128xf32>
    tpu.vector_store %arg16[%c0_50, %c0_51], %95 {strides = array<i32>} : memref<2x128xf32, #tpu.memory_space<vmem>>, vector<2x128xf32>,
    return
  }
}

</mosaic_0001>

<llo_original>
// kernel: forward.1
$region0: #{forward.1}
  #allocation0 [shape = 'u32[]', space=smem, size = 0x4, offset = 0x4, fixed_abs, tag = 'smem constant byte address 0x4 - core index']
  #allocation1 [shape = 'u32[144,128]{1,0:T(1,128)}', space=vmem, size = 0x12000, scoped, tag = 'internal scratch']
  %s0 = inlined_call_operand.vmem [shape: f32[8,256], index: 0, kind: input, shape index: {}]
  %s1 = inlined_call_operand.vmem [shape: f32[8,16], index: 1, kind: input, shape index: {}]
  %s2 = inlined_call_operand.vmem [shape: f32[256,32], index: 2, kind: input, shape index: {}]
  %s3 = inlined_call_operand.vmem [shape: f32[1,32], index: 3, kind: input, shape index: {}]
  %s4 = inlined_call_operand.vmem [shape: f32[32,16], index: 4, kind: input, shape index: {}]
  %s5 = inlined_call_operand.vmem [shape: f32[1,16], index: 5, kind: input, shape index: {}]
  %s6 = inlined_call_operand.vmem [shape: f32[16,32], index: 6, kind: input, shape index: {}]
  %s7 = inlined_call_operand.vmem [shape: f32[1,32], index: 7, kind: input, shape index: {}]
  %s8 = inlined_call_operand.vmem [shape: f32[32,512], index: 8, kind: input, shape index: {}]
  %s9 = inlined_call_operand.vmem [shape: f32[1,512], index: 9, kind: input, shape index: {}]
  %s10 = inlined_call_operand.vmem [shape: f32[48,16], index: 10, kind: input, shape index: {}]
  %s11 = inlined_call_operand.vmem [shape: f32[1,16], index: 11, kind: input, shape index: {}]
  %s12 = inlined_call_operand.vmem [shape: f32[8,16], index: 12, kind: output, shape index: {0}]
  %s13 = inlined_call_operand.vmem [shape: f32[8,16], index: 13, kind: output, shape index: {1}]
  %s14 = inlined_call_operand.vmem [shape: f32[2,16], index: 14, kind: output, shape index: {2}]
  %s15 = inlined_call_operand.vmem [shape: f32[2,512], index: 15, kind: output, shape index: {3}]
  %s16 = inlined_call_operand.vmem [shape: f32[2,128], index: 16, kind: output, shape index: {4}]
  %17 = xla_tuple %s12, %s13, %s14, %s15, %s16
  %s18 = sld [smem:[#allocation0]]
  $region90: #{forward.1} parent=0
    _
  %s20 = ssub.s32 1, %s18
  %s21 = scalar_select 0, %s20, %s18
  // Predicated region
  $region2: #{forward.1} parent=0 // pred_check
    _
  $region3: #{forward.1} parent=0 // pred_check_branch
    %23 = sbr.rel (0) target = $region5
  $region4: #{forward.1} parent=0 // pred_region
    _
  $region5: #{forward.1} parent=0 // pred_fallthru
    _
  // Predicated region
  $region6: #{forward.1} parent=0 // pred_check
    _
  $region7: #{forward.1} parent=0 // pred_check_branch
    %25 = sbr.rel (0) target = $region9
  $region8: #{forward.1} parent=0 // pred_region
    _
  $region9: #{forward.1} parent=0 // pred_fallthru
    _
  // Predicated region
  $region10: #{forward.1} parent=0 // pred_check
    _
  $region11: #{forward.1} parent=0 // pred_check_branch
    %27 = sbr.rel (0) target = $region13
  $region12: #{forward.1} parent=0 // pred_region
    _
  $region13: #{forward.1} parent=0 // pred_fallthru
    _
  // Predicated region
  $region14: #{forward.1} parent=0 // pred_check
    _
  $region15: #{forward.1} parent=0 // pred_check_branch
    %29 = sbr.rel (0) target = $region17
  $region16: #{forward.1} parent=0 // pred_region
    _
  $region17: #{forward.1} parent=0 // pred_fallthru
    _
  // Predicated region
  $region18: #{forward.1} parent=0 // pred_check
    _
  $region19: #{forward.1} parent=0 // pred_check_branch
    %31 = sbr.rel (0) target = $region21
  $region20: #{forward.1} parent=0 // pred_region
    _
  $region21: #{forward.1} parent=0 // pred_fallthru
    _
  // Predicated region
  $region22: #{forward.1} parent=0 // pred_check
    _
  $region23: #{forward.1} parent=0 // pred_check_branch
    %33 = sbr.rel (0) target = $region25
  $region24: #{forward.1} parent=0 // pred_region
    _
  $region25: #{forward.1} parent=0 // pred_fallthru
    _
  // Predicated region
  $region26: #{forward.1} parent=0 // pred_check
    _
  $region27: #{forward.1} parent=0 // pred_check_branch
    %35 = sbr.rel (0) target = $region29
  $region28: #{forward.1} parent=0 // pred_region
    _
  $region29: #{forward.1} parent=0 // pred_fallthru
    _
  // Predicated region
  $region30: #{forward.1} parent=0 // pred_check
    _
  $region31: #{forward.1} parent=0 // pred_check_branch
    %37 = sbr.rel (0) target = $region33
  $region32: #{forward.1} parent=0 // pred_region
    _
  $region33: #{forward.1} parent=0 // pred_fallthru
    _
  // Predicated region
  $region34: #{forward.1} parent=0 // pred_check
    _
  $region35: #{forward.1} parent=0 // pred_check_branch
    %39 = sbr.rel (0) target = $region37
  $region36: #{forward.1} parent=0 // pred_region
    _
  $region37: #{forward.1} parent=0 // pred_fallthru
    _
  // Predicated region
  $region38: #{forward.1} parent=0 // pred_check
    _
  $region39: #{forward.1} parent=0 // pred_check_branch
    %41 = sbr.rel (0) target = $region41
  $region40: #{forward.1} parent=0 // pred_region
    _
  $region41: #{forward.1} parent=0 // pred_fallthru
    _
  // Predicated region
  $region42: #{forward.1} parent=0 // pred_check
    _
  $region43: #{forward.1} parent=0 // pred_check_branch
    %43 = sbr.rel (0) target = $region45
  $region44: #{forward.1} parent=0 // pred_region
    _
  $region45: #{forward.1} parent=0 // pred_fallthru
    _
  // Predicated region
  $region46: #{forward.1} parent=0 // pred_check
    _
  $region47: #{forward.1} parent=0 // pred_check_branch
    %45 = sbr.rel (0) target = $region49
  $region48: #{forward.1} parent=0 // pred_region
    _
  $region49: #{forward.1} parent=0 // pred_fallthru
    _
  %v46 = vld [vmem:[%s0] sm:$0xff]
  %v47 = vld [vmem:[%s0 + $0x8] sm:$0xff]
  %v48 = vld [vmem:[%s2] sm:$0xff]
  %v49 = vld [vmem:[%s2 + $0x8] sm:$0xff]
  %v50 = vld [vmem:[%s2 + $0x10] sm:$0xff]
  %v51 = vld [vmem:[%s2 + $0x18] sm:$0xff]
  %v52 = vld [vmem:[%s2 + $0x20] sm:$0xff]
  %v53 = vld [vmem:[%s2 + $0x28] sm:$0xff]
  %v54 = vld [vmem:[%s2 + $0x30] sm:$0xff]
  %v55 = vld [vmem:[%s2 + $0x38] sm:$0xff]
  %v56 = vld [vmem:[%s2 + $0x40] sm:$0xff]
  %v57 = vld [vmem:[%s2 + $0x48] sm:$0xff]
  %v58 = vld [vmem:[%s2 + $0x50] sm:$0xff]
  %v59 = vld [vmem:[%s2 + $0x58] sm:$0xff]
  %v60 = vld [vmem:[%s2 + $0x60] sm:$0xff]
  %v61 = vld [vmem:[%s2 + $0x68] sm:$0xff]
  %v62 = vld [vmem:[%s2 + $0x70] sm:$0xff]
  %v63 = vld [vmem:[%s2 + $0x78] sm:$0xff]
  %v64 = vld [vmem:[%s2 + $0x80] sm:$0xff]
  %v65 = vld [vmem:[%s2 + $0x88] sm:$0xff]
  %v66 = vld [vmem:[%s2 + $0x90] sm:$0xff]
  %v67 = vld [vmem:[%s2 + $0x98] sm:$0xff]
  %v68 = vld [vmem:[%s2 + $0xa0] sm:$0xff]
  %v69 = vld [vmem:[%s2 + $0xa8] sm:$0xff]
  %v70 = vld [vmem:[%s2 + $0xb0] sm:$0xff]
  %v71 = vld [vmem:[%s2 + $0xb8] sm:$0xff]
  %v72 = vld [vmem:[%s2 + $0xc0] sm:$0xff]
  %v73 = vld [vmem:[%s2 + $0xc8] sm:$0xff]
  %v74 = vld [vmem:[%s2 + $0xd0] sm:$0xff]
  %v75 = vld [vmem:[%s2 + $0xd8] sm:$0xff]
  %v76 = vld [vmem:[%s2 + $0xe0] sm:$0xff]
  %v77 = vld [vmem:[%s2 + $0xe8] sm:$0xff]
  %v78 = vld [vmem:[%s2 + $0xf0] sm:$0xff]
  %v79 = vld [vmem:[%s2 + $0xf8] sm:$0xff]
  %v80 = vld [vmem:[%s3] sm:$0x1]
  %v82 = vlaneseq
  %v83 = vshrl.u32 %v82, 7
  %v84 = vsub.s32 0, %v83
  %v85 = vrot.slane %v80, %v84
  %87 = vmatprep.subr.mxu0 0.0
  %88 = vmatpush1.msra.mxu0 %v48
  %89 = vmatprep.subr.mxu0 0.0
  %90 = vmatpush1.msra.mxu0 %v49
  %91 = vmatprep.subr.mxu0 0.0
  %92 = vmatpush1.msra.mxu0 %v50
  %93 = vmatprep.subr.mxu0 0.0
  %94 = vmatpush1.msra.mxu0 %v51
  %95 = vmatprep.subr.mxu0 0.0
  %96 = vmatpush1.msra.mxu0 %v52
  %97 = vmatprep.subr.mxu0 0.0
  %98 = vmatpush1.msra.mxu0 %v53
  %99 = vmatprep.subr.mxu0 0.0
  %100 = vmatpush1.msra.mxu0 %v54
  %101 = vmatprep.subr.mxu0 0.0
  %102 = vmatpush1.msra.mxu0 %v55
  %103 = vmatprep.subr.mxu0 0.0
  %104 = vmatpush1.msra.mxu0 %v56
  %105 = vmatprep.subr.mxu0 0.0
  %106 = vmatpush1.msra.mxu0 %v57
  %107 = vmatprep.subr.mxu0 0.0
  %108 = vmatpush1.msra.mxu0 %v58
  %109 = vmatprep.subr.mxu0 0.0
  %110 = vmatpush1.msra.mxu0 %v59
  %111 = vmatprep.subr.mxu0 0.0
  %112 = vmatpush1.msra.mxu0 %v60
  %113 = vmatprep.subr.mxu0 0.0
  %114 = vmatpush1.msra.mxu0 %v61
  %115 = vmatprep.subr.mxu0 0.0
  %116 = vmatpush1.msra.mxu0 %v62
  %117 = vmatprep.subr.mxu0 0.0
  %118 = vmatpush1.msra.mxu0 %v63
  %119 = vmatprep.subr.mxu0 0.0
  %120 = vmatpush1.msra.mxu0 %v64
  %121 = vmatprep.subr.mxu0 0.0
  %122 = vmatpush1.msra.mxu0 %v65
  %123 = vmatprep.subr.mxu0 0.0
  %124 = vmatpush1.msra.mxu0 %v66
  %125 = vmatprep.subr.mxu0 0.0
  %126 = vmatpush1.msra.mxu0 %v67
  %127 = vmatprep.subr.mxu0 0.0
  %128 = vmatpush1.msra.mxu0 %v68
  %129 = vmatprep.subr.mxu0 0.0
  %130 = vmatpush1.msra.mxu0 %v69
  %131 = vmatprep.subr.mxu0 0.0
  %132 = vmatpush1.msra.mxu0 %v70
  %133 = vmatprep.subr.mxu0 0.0
  %134 = vmatpush1.msra.mxu0 %v71
  %135 = vmatprep.subr.mxu0 0.0
  %136 = vmatpush1.msra.mxu0 %v72
  %137 = vmatprep.subr.mxu0 0.0
  %138 = vmatpush1.msra.mxu0 %v73
  %139 = vmatprep.subr.mxu0 0.0
  %140 = vmatpush1.msra.mxu0 %v74
  %141 = vmatprep.subr.mxu0 0.0
  %142 = vmatpush1.msra.mxu0 %v75
  %143 = vmatprep.subr.mxu0 0.0
  %144 = vmatpush1.msra.mxu0 %v76
  %145 = vmatprep.subr.mxu0 0.0
  %146 = vmatpush1.msra.mxu0 %v77
  %147 = vmatprep.subr.mxu0 0.0
  %148 = vmatpush1.msra.mxu0 %v78
  %149 = vmatprep.subr.mxu0 0.0
  %150 = vmatpush1.msra.mxu0 %v79
  %151 = vmatprep.mubr.f32.mxu0 %v47
  %152 = vmatmul.mubr.f32.gmra.mrb[0].mxu0 %v46
  %v153 = vpop.f32.mrb[0].mxu0
  %v154 = vadd.f32 %v85, %v153
  %v155 = vpop.f32.mrb[0].mxu0
  %156 = vdwg.mxu0
  %v157 = vmax.f32 %v154, 0.0
  %v158 = vld [vmem:[%s4] sm:$0xff]
  %v159 = vld [vmem:[%s4 + $0x8] sm:$0xff]
  %v160 = vld [vmem:[%s4 + $0x10] sm:$0xff]
  %v161 = vld [vmem:[%s4 + $0x18] sm:$0xff]
  %v162 = vld [vmem:[%s5] sm:$0x1]
  %v164 = vlaneseq
  %v165 = vshrl.u32 %v164, 7
  %v166 = vsub.s32 0, %v165
  %v167 = vrot.slane %v162, %v166
  %vm169 = vcmask 261120
  %v171 = vsel %vm169, %v157, 0
  %173 = vmatprep.subr.mxu0 0.0
  %174 = vmatpush1.msra.mxu0 %v158
  %175 = vmatprep.subr.mxu0 0.0
  %176 = vmatpush1.msra.mxu0 %v159
  %177 = vmatprep.subr.mxu0 0.0
  %178 = vmatpush1.msra.mxu0 %v160
  %179 = vmatprep.subr.mxu0 0.0
  %180 = vmatpush1.msra.mxu0 %v161
  %181 = vmatprep.subr.mxu0 0.0
  %182 = vmatpush1.msra.mxu0 0.0
  %183 = vmatprep.subr.mxu0 0.0
  %184 = vmatpush1.msra.mxu0 0.0
  %185 = vmatprep.subr.mxu0 0.0
  %186 = vmatpush1.msra.mxu0 0.0
  %187 = vmatprep.subr.mxu0 0.0
  %188 = vmatpush1.msra.mxu0 0.0
  %189 = vmatprep.subr.mxu0 0.0
  %190 = vmatpush1.msra.mxu0 0.0
  %191 = vmatprep.subr.mxu0 0.0
  %192 = vmatpush1.msra.mxu0 0.0
  %193 = vmatprep.subr.mxu0 0.0
  %194 = vmatpush1.msra.mxu0 0.0
  %195 = vmatprep.subr.mxu0 0.0
  %196 = vmatpush1.msra.mxu0 0.0
  %197 = vmatprep.subr.mxu0 0.0
  %198 = vmatpush1.msra.mxu0 0.0
  %199 = vmatprep.subr.mxu0 0.0
  %200 = vmatpush1.msra.mxu0 0.0
  %201 = vmatprep.subr.mxu0 0.0
  %202 = vmatpush1.msra.mxu0 0.0
  %203 = vmatprep.subr.mxu0 0.0
  %204 = vmatpush1.msra.mxu0 0.0
  %205 = vmatprep.subr.mxu0 0.0
  %206 = vmatpush1.msra.mxu0 0.0
  %207 = vmatprep.subr.mxu0 0.0
  %208 = vmatpush1.msra.mxu0 0.0
  %209 = vmatprep.subr.mxu0 0.0
  %210 = vmatpush1.msra.mxu0 0.0
  %211 = vmatprep.subr.mxu0 0.0
  %212 = vmatpush1.msra.mxu0 0.0
  %213 = vmatprep.subr.mxu0 0.0
  %214 = vmatpush1.msra.mxu0 0.0
  %215 = vmatprep.subr.mxu0 0.0
  %216 = vmatpush1.msra.mxu0 0.0
  %217 = vmatprep.subr.mxu0 0.0
  %218 = vmatpush1.msra.mxu0 0.0
  %219 = vmatprep.subr.mxu0 0.0
  %220 = vmatpush1.msra.mxu0 0.0
  %221 = vmatprep.subr.mxu0 0.0
  %222 = vmatpush1.msra.mxu0 0.0
  %223 = vmatprep.subr.mxu0 0.0
  %224 = vmatpush1.msra.mxu0 0.0
  %225 = vmatprep.subr.mxu0 0.0
  %226 = vmatpush1.msra.mxu0 0.0
  %227 = vmatprep.subr.mxu0 0.0
  %228 = vmatpush1.msra.mxu0 0.0
  %229 = vmatprep.subr.mxu0 0.0
  %230 = vmatpush1.msra.mxu0 0.0
  %231 = vmatprep.subr.mxu0 0.0
  %232 = vmatpush1.msra.mxu0 0.0
  %233 = vmatprep.subr.mxu0 0.0
  %234 = vmatpush1.msra.mxu0 0.0
  %235 = vmatprep.subr.mxu0 0.0
  %236 = vmatpush1.msra.mxu0 0.0
  %237 = vmatprep.mubr.f32.mxu0 0.0
  %238 = vmatmul.mubr.f32.gmra.mrb[0].mxu0 %v171
  %v239 = vpop.f32.mrb[0].mxu0
  %v240 = vadd.f32 %v167, %v239
  %v241 = vpop.f32.mrb[0].mxu0
  %242 = vdwg.mxu0
  %v243 = vld [vmem:[%s1] sm:$0xff]
  %v244 = vmul.f32 %v243, 0.1
  %v245 = vadd.f32 %v240, %v244
  %vm246 = vcmask 130048
  %247 = vst.msk [vmem:[%s13] sm:$0xff] %vm246, %v240
  %248 = vst.msk [vmem:[%s12] sm:$0xff] %vm246, %v245
  %v249 = vld [vmem:[%s10] sm:$0xff]
  %v250 = vld [vmem:[%s10 + $0x8] sm:$0xff]
  %v251 = vld [vmem:[%s10 + $0x10] sm:$0xff]
  %v252 = vld [vmem:[%s10 + $0x18] sm:$0xff]
  %v253 = vld [vmem:[%s10 + $0x20] sm:$0xff]
  %v254 = vld [vmem:[%s10 + $0x28] sm:$0xff]
  %v256 = vrot.slane %v245, 4
  %v257 = vsel %vm246, %v256, 0
  %259 = vmatprep.subr.mxu0 0.0
  %260 = vmatpush1.msra.mxu0 %v251
  %261 = vmatprep.subr.mxu0 0.0
  %262 = vmatpush1.msra.mxu0 %v252
  %263 = vmatprep.subr.mxu0 0.0
  %264 = vmatpush1.msra.mxu0 0.0
  %265 = vmatprep.subr.mxu0 0.0
  %266 = vmatpush1.msra.mxu0 0.0
  %267 = vmatprep.subr.mxu0 0.0
  %268 = vmatpush1.msra.mxu0 0.0
  %269 = vmatprep.subr.mxu0 0.0
  %270 = vmatpush1.msra.mxu0 0.0
  %271 = vmatprep.subr.mxu0 0.0
  %272 = vmatpush1.msra.mxu0 0.0
  %273 = vmatprep.subr.mxu0 0.0
  %274 = vmatpush1.msra.mxu0 0.0
  %275 = vmatprep.subr.mxu0 0.0
  %276 = vmatpush1.msra.mxu0 0.0
  %277 = vmatprep.subr.mxu0 0.0
  %278 = vmatpush1.msra.mxu0 0.0
  %279 = vmatprep.subr.mxu0 0.0
  %280 = vmatpush1.msra.mxu0 0.0
  %281 = vmatprep.subr.mxu0 0.0
  %282 = vmatpush1.msra.mxu0 0.0
  %283 = vmatprep.subr.mxu0 0.0
  %284 = vmatpush1.msra.mxu0 0.0
  %285 = vmatprep.subr.mxu0 0.0
  %286 = vmatpush1.msra.mxu0 0.0
  %287 = vmatprep.subr.mxu0 0.0
  %288 = vmatpush1.msra.mxu0 0.0
  %289 = vmatprep.subr.mxu0 0.0
  %290 = vmatpush1.msra.mxu0 0.0
  %291 = vmatprep.subr.mxu0 0.0
  %292 = vmatpush1.msra.mxu0 0.0
  %293 = vmatprep.subr.mxu0 0.0
  %294 = vmatpush1.msra.mxu0 0.0
  %295 = vmatprep.subr.mxu0 0.0
  %296 = vmatpush1.msra.mxu0 0.0
  %297 = vmatprep.subr.mxu0 0.0
  %298 = vmatpush1.msra.mxu0 0.0
  %299 = vmatprep.subr.mxu0 0.0
  %300 = vmatpush1.msra.mxu0 0.0
  %301 = vmatprep.subr.mxu0 0.0
  %302 = vmatpush1.msra.mxu0 0.0
  %303 = vmatprep.subr.mxu0 0.0
  %304 = vmatpush1.msra.mxu0 0.0
  %305 = vmatprep.subr.mxu0 0.0
  %306 = vmatpush1.msra.mxu0 0.0
  %307 = vmatprep.subr.mxu0 0.0
  %308 = vmatpush1.msra.mxu0 0.0
  %309 = vmatprep.subr.mxu0 0.0
  %310 = vmatpush1.msra.mxu0 0.0
  %311 = vmatprep.subr.mxu0 0.0
  %312 = vmatpush1.msra.mxu0 0.0
  %313 = vmatprep.subr.mxu0 0.0
  %314 = vmatpush1.msra.mxu0 0.0
  %315 = vmatprep.subr.mxu0 0.0
  %316 = vmatpush1.msra.mxu0 0.0
  %317 = vmatprep.subr.mxu0 0.0
  %318 = vmatpush1.msra.mxu0 0.0
  %319 = vmatprep.subr.mxu0 0.0
  %320 = vmatpush1.msra.mxu0 0.0
  %321 = vmatprep.subr.mxu0 0.0
  %322 = vmatpush1.msra.mxu0 0.0
  %323 = vmatprep.mubr.f32.mxu0 0.0
  %324 = vmatmul.mubr.f32.gmra.mrb[0].mxu0 %v257
  %v325 = vpop.f32.mrb[0].mxu0
  %v326 = vadd.f32 0.0, %v325
  %v327 = vpop.f32.mrb[0].mxu0
  %328 = vdwg.mxu0
  %v329 = vrot.slane %v245, 2
  %v330 = vsel %vm246, %v329, 0
  %332 = vmatprep.subr.mxu0 0.0
  %333 = vmatpush1.msra.mxu0 %v249
  %334 = vmatprep.subr.mxu0 0.0
  %335 = vmatpush1.msra.mxu0 %v250
  %336 = vmatprep.subr.mxu0 0.0
  %337 = vmatpush1.msra.mxu0 0.0
  %338 = vmatprep.subr.mxu0 0.0
  %339 = vmatpush1.msra.mxu0 0.0
  %340 = vmatprep.subr.mxu0 0.0
  %341 = vmatpush1.msra.mxu0 0.0
  %342 = vmatprep.subr.mxu0 0.0
  %343 = vmatpush1.msra.mxu0 0.0
  %344 = vmatprep.subr.mxu0 0.0
  %345 = vmatpush1.msra.mxu0 0.0
  %346 = vmatprep.subr.mxu0 0.0
  %347 = vmatpush1.msra.mxu0 0.0
  %348 = vmatprep.subr.mxu0 0.0
  %349 = vmatpush1.msra.mxu0 0.0
  %350 = vmatprep.subr.mxu0 0.0
  %351 = vmatpush1.msra.mxu0 0.0
  %352 = vmatprep.subr.mxu0 0.0
  %353 = vmatpush1.msra.mxu0 0.0
  %354 = vmatprep.subr.mxu0 0.0
  %355 = vmatpush1.msra.mxu0 0.0
  %356 = vmatprep.subr.mxu0 0.0
  %357 = vmatpush1.msra.mxu0 0.0
  %358 = vmatprep.subr.mxu0 0.0
  %359 = vmatpush1.msra.mxu0 0.0
  %360 = vmatprep.subr.mxu0 0.0
  %361 = vmatpush1.msra.mxu0 0.0
  %362 = vmatprep.subr.mxu0 0.0
  %363 = vmatpush1.msra.mxu0 0.0
  %364 = vmatprep.subr.mxu0 0.0
  %365 = vmatpush1.msra.mxu0 0.0
  %366 = vmatprep.subr.mxu0 0.0
  %367 = vmatpush1.msra.mxu0 0.0
  %368 = vmatprep.subr.mxu0 0.0
  %369 = vmatpush1.msra.mxu0 0.0
  %370 = vmatprep.subr.mxu0 0.0
  %371 = vmatpush1.msra.mxu0 0.0
  %372 = vmatprep.subr.mxu0 0.0
  %373 = vmatpush1.msra.mxu0 0.0
  %374 = vmatprep.subr.mxu0 0.0
  %375 = vmatpush1.msra.mxu0 0.0
  %376 = vmatprep.subr.mxu0 0.0
  %377 = vmatpush1.msra.mxu0 0.0
  %378 = vmatprep.subr.mxu0 0.0
  %379 = vmatpush1.msra.mxu0 0.0
  %380 = vmatprep.subr.mxu0 0.0
  %381 = vmatpush1.msra.mxu0 0.0
  %382 = vmatprep.subr.mxu0 0.0
  %383 = vmatpush1.msra.mxu0 0.0
  %384 = vmatprep.subr.mxu0 0.0
  %385 = vmatpush1.msra.mxu0 0.0
  %386 = vmatprep.subr.mxu0 0.0
  %387 = vmatpush1.msra.mxu0 0.0
  %388 = vmatprep.subr.mxu0 0.0
  %389 = vmatpush1.msra.mxu0 0.0
  %390 = vmatprep.subr.mxu0 0.0
  %391 = vmatpush1.msra.mxu0 0.0
  %392 = vmatprep.subr.mxu0 0.0
  %393 = vmatpush1.msra.mxu0 0.0
  %394 = vmatprep.subr.mxu0 0.0
  %395 = vmatpush1.msra.mxu0 0.0
  %396 = vmatprep.mubr.f32.mxu0 0.0
  %397 = vmatmul.mubr.f32.gmra.mrb[0].mxu0 %v330
  %v398 = vpop.f32.mrb[0].mxu0
  %v399 = vadd.f32 %v326, %v398
  %v400 = vpop.f32.mrb[0].mxu0
  %401 = vdwg.mxu0
  %v402 = vrot.slane %v245, 6
  %v403 = vsel %vm246, %v402, 0
  %405 = vmatprep.subr.mxu0 0.0
  %406 = vmatpush1.msra.mxu0 %v253
  %407 = vmatprep.subr.mxu0 0.0
  %408 = vmatpush1.msra.mxu0 %v254
  %409 = vmatprep.subr.mxu0 0.0
  %410 = vmatpush1.msra.mxu0 0.0
  %411 = vmatprep.subr.mxu0 0.0
  %412 = vmatpush1.msra.mxu0 0.0
  %413 = vmatprep.subr.mxu0 0.0
  %414 = vmatpush1.msra.mxu0 0.0
  %415 = vmatprep.subr.mxu0 0.0
  %416 = vmatpush1.msra.mxu0 0.0
  %417 = vmatprep.subr.mxu0 0.0
  %418 = vmatpush1.msra.mxu0 0.0
  %419 = vmatprep.subr.mxu0 0.0
  %420 = vmatpush1.msra.mxu0 0.0
  %421 = vmatprep.subr.mxu0 0.0
  %422 = vmatpush1.msra.mxu0 0.0
  %423 = vmatprep.subr.mxu0 0.0
  %424 = vmatpush1.msra.mxu0 0.0
  %425 = vmatprep.subr.mxu0 0.0
  %426 = vmatpush1.msra.mxu0 0.0
  %427 = vmatprep.subr.mxu0 0.0
  %428 = vmatpush1.msra.mxu0 0.0
  %429 = vmatprep.subr.mxu0 0.0
  %430 = vmatpush1.msra.mxu0 0.0
  %431 = vmatprep.subr.mxu0 0.0
  %432 = vmatpush1.msra.mxu0 0.0
  %433 = vmatprep.subr.mxu0 0.0
  %434 = vmatpush1.msra.mxu0 0.0
  %435 = vmatprep.subr.mxu0 0.0
  %436 = vmatpush1.msra.mxu0 0.0
  %437 = vmatprep.subr.mxu0 0.0
  %438 = vmatpush1.msra.mxu0 0.0
  %439 = vmatprep.subr.mxu0 0.0
  %440 = vmatpush1.msra.mxu0 0.0
  %441 = vmatprep.subr.mxu0 0.0
  %442 = vmatpush1.msra.mxu0 0.0
  %443 = vmatprep.subr.mxu0 0.0
  %444 = vmatpush1.msra.mxu0 0.0
  %445 = vmatprep.subr.mxu0 0.0
  %446 = vmatpush1.msra.mxu0 0.0
  %447 = vmatprep.subr.mxu0 0.0
  %448 = vmatpush1.msra.mxu0 0.0
  %449 = vmatprep.subr.mxu0 0.0
  %450 = vmatpush1.msra.mxu0 0.0
  %451 = vmatprep.subr.mxu0 0.0
  %452 = vmatpush1.msra.mxu0 0.0
  %453 = vmatprep.subr.mxu0 0.0
  %454 = vmatpush1.msra.mxu0 0.0
  %455 = vmatprep.subr.mxu0 0.0
  %456 = vmatpush1.msra.mxu0 0.0
  %457 = vmatprep.subr.mxu0 0.0
  %458 = vmatpush1.msra.mxu0 0.0
  %459 = vmatprep.subr.mxu0 0.0
  %460 = vmatpush1.msra.mxu0 0.0
  %461 = vmatprep.subr.mxu0 0.0
  %462 = vmatpush1.msra.mxu0 0.0
  %463 = vmatprep.subr.mxu0 0.0
  %464 = vmatpush1.msra.mxu0 0.0
  %465 = vmatprep.subr.mxu0 0.0
  %466 = vmatpush1.msra.mxu0 0.0
  %467 = vmatprep.subr.mxu0 0.0
  %468 = vmatpush1.msra.mxu0 0.0
  %469 = vmatprep.mubr.f32.mxu0 0.0
  %470 = vmatmul.mubr.f32.gmra.mrb[0].mxu0 %v403
  %v471 = vpop.f32.mrb[0].mxu0
  %v472 = vadd.f32 0.0, %v471
  %v473 = vpop.f32.mrb[0].mxu0
  %474 = vdwg.mxu0
  %v475 = vadd.f32 %v399, %v472
  %v476 = vld [vmem:[%s11] sm:$0x1]
  %v478 = vlaneseq
  %v479 = vshrl.u32 %v478, 7
  %v480 = vsub.s32 0, %v479
  %v481 = vrot.slane %v476, %v480
  %v483 = vadd.f32 %v475, %v481
  %vm484 = vcmask 123904
  %485 = vst.msk [vmem:[%s14] sm:$0x3] %vm484, %v483
  %v486 = vld [vmem:[%s6] sm:$0xff]
  %v487 = vld [vmem:[%s6 + $0x8] sm:$0xff]
  %v488 = vld [vmem:[%s7] sm:$0x1]
  %v490 = vlaneseq
  %v491 = vshrl.u32 %v490, 7
  %v492 = vsub.s32 0, %v491
  %v493 = vrot.slane %v488, %v492
  %v495 = vsel %vm246, %v245, 0
  %497 = vmatprep.subr.mxu0 0.0
  %498 = vmatpush1.msra.mxu0 %v486
  %499 = vmatprep.subr.mxu0 0.0
  %500 = vmatpush1.msra.mxu0 %v487
  %501 = vmatprep.subr.mxu0 0.0
  %502 = vmatpush1.msra.mxu0 0.0
  %503 = vmatprep.subr.mxu0 0.0
  %504 = vmatpush1.msra.mxu0 0.0
  %505 = vmatprep.subr.mxu0 0.0
  %506 = vmatpush1.msra.mxu0 0.0
  %507 = vmatprep.subr.mxu0 0.0
  %508 = vmatpush1.msra.mxu0 0.0
  %509 = vmatprep.subr.mxu0 0.0
  %510 = vmatpush1.msra.mxu0 0.0
  %511 = vmatprep.subr.mxu0 0.0
  %512 = vmatpush1.msra.mxu0 0.0
  %513 = vmatprep.subr.mxu0 0.0
  %514 = vmatpush1.msra.mxu0 0.0
  %515 = vmatprep.subr.mxu0 0.0
  %516 = vmatpush1.msra.mxu0 0.0
  %517 = vmatprep.subr.mxu0 0.0
  %518 = vmatpush1.msra.mxu0 0.0
  %519 = vmatprep.subr.mxu0 0.0
  %520 = vmatpush1.msra.mxu0 0.0
  %521 = vmatprep.subr.mxu0 0.0
  %522 = vmatpush1.msra.mxu0 0.0
  %523 = vmatprep.subr.mxu0 0.0
  %524 = vmatpush1.msra.mxu0 0.0
  %525 = vmatprep.subr.mxu0 0.0
  %526 = vmatpush1.msra.mxu0 0.0
  %527 = vmatprep.subr.mxu0 0.0
  %528 = vmatpush1.msra.mxu0 0.0
  %529 = vmatprep.subr.mxu0 0.0
  %530 = vmatpush1.msra.mxu0 0.0
  %531 = vmatprep.subr.mxu0 0.0
  %532 = vmatpush1.msra.mxu0 0.0
  %533 = vmatprep.subr.mxu0 0.0
  %534 = vmatpush1.msra.mxu0 0.0
  %535 = vmatprep.subr.mxu0 0.0
  %536 = vmatpush1.msra.mxu0 0.0
  %537 = vmatprep.subr.mxu0 0.0
  %538 = vmatpush1.msra.mxu0 0.0
  %539 = vmatprep.subr.mxu0 0.0
  %540 = vmatpush1.msra.mxu0 0.0
  %541 = vmatprep.subr.mxu0 0.0
  %542 = vmatpush1.msra.mxu0 0.0
  %543 = vmatprep.subr.mxu0 0.0
  %544 = vmatpush1.msra.mxu0 0.0
  %545 = vmatprep.subr.mxu0 0.0
  %546 = vmatpush1.msra.mxu0 0.0
  %547 = vmatprep.subr.mxu0 0.0
  %548 = vmatpush1.msra.mxu0 0.0
  %549 = vmatprep.subr.mxu0 0.0
  %550 = vmatpush1.msra.mxu0 0.0
  %551 = vmatprep.subr.mxu0 0.0
  %552 = vmatpush1.msra.mxu0 0.0
  %553 = vmatprep.subr.mxu0 0.0
  %554 = vmatpush1.msra.mxu0 0.0
  %555 = vmatprep.subr.mxu0 0.0
  %556 = vmatpush1.msra.mxu0 0.0
  %557 = vmatprep.subr.mxu0 0.0
  %558 = vmatpush1.msra.mxu0 0.0
  %559 = vmatprep.subr.mxu0 0.0
  %560 = vmatpush1.msra.mxu0 0.0
  %561 = vmatprep.mubr.f32.mxu0 0.0
  %562 = vmatmul.mubr.f32.gmra.mrb[0].mxu0 %v495
  %v563 = vpop.f32.mrb[0].mxu0
  %v564 = vadd.f32 %v493, %v563
  %v565 = vpop.f32.mrb[0].mxu0
  %566 = vdwg.mxu0
  %v567 = vmax.f32 %v564, 0.0
  %v568 = vld [vmem:[%s8] sm:$0xff]
  %v569 = vld [vmem:[%s8 + $0x8] sm:$0xff]
  %v570 = vld [vmem:[%s8 + $0x10] sm:$0xff]
  %v571 = vld [vmem:[%s8 + $0x18] sm:$0xff]
  %v572 = vld [vmem:[%s8 + $0x20] sm:$0xff]
  %v573 = vld [vmem:[%s8 + $0x28] sm:$0xff]
  %v574 = vld [vmem:[%s8 + $0x30] sm:$0xff]
  %v575 = vld [vmem:[%s8 + $0x38] sm:$0xff]
  %v576 = vld [vmem:[%s8 + $0x40] sm:$0xff]
  %v577 = vld [vmem:[%s8 + $0x48] sm:$0xff]
  %v578 = vld [vmem:[%s8 + $0x50] sm:$0xff]
  %v579 = vld [vmem:[%s8 + $0x58] sm:$0xff]
  %v580 = vld [vmem:[%s8 + $0x60] sm:$0xff]
  %v581 = vld [vmem:[%s8 + $0x68] sm:$0xff]
  %v582 = vld [vmem:[%s8 + $0x70] sm:$0xff]
  %v583 = vld [vmem:[%s8 + $0x78] sm:$0xff]
  %v584 = vld [vmem:[%s9] sm:$0xf]
  %v586 = vlaneseq
  %v587 = vshrl.u32 %v586, 7
  %v588 = vsub.s32 0, %v587
  %v589 = vrot.slane %v584, %v588
  %v590 = vlaneseq
  %v591 = vshrl.u32 %v590, 7
  %v592 = vsub.s32 1, %v591
  %v593 = vrot.slane %v584, %v592
  %v594 = vlaneseq
  %v595 = vshrl.u32 %v594, 7
  %v596 = vsub.s32 2, %v595
  %v597 = vrot.slane %v584, %v596
  %v598 = vlaneseq
  %v599 = vshrl.u32 %v598, 7
  %v600 = vsub.s32 3, %v599
  %v601 = vrot.slane %v584, %v600
  %v607 = vsel %vm169, %v567, 0
  %609 = vmatprep.subr.mxu0 %v569
  %610 = vmatpush1.msra.mxu0 %v568
  %611 = vmatprep.subr.mxu0 %v573
  %612 = vmatpush1.msra.mxu0 %v572
  %613 = vmatprep.subr.mxu0 %v577
  %614 = vmatpush1.msra.mxu0 %v576
  %615 = vmatprep.subr.mxu0 %v581
  %616 = vmatpush1.msra.mxu0 %v580
  %617 = vmatprep.subr.mxu0 0.0
  %618 = vmatpush1.msra.mxu0 0.0
  %619 = vmatprep.subr.mxu0 0.0
  %620 = vmatpush1.msra.mxu0 0.0
  %621 = vmatprep.subr.mxu0 0.0
  %622 = vmatpush1.msra.mxu0 0.0
  %623 = vmatprep.subr.mxu0 0.0
  %624 = vmatpush1.msra.mxu0 0.0
  %625 = vmatprep.subr.mxu0 0.0
  %626 = vmatpush1.msra.mxu0 0.0
  %627 = vmatprep.subr.mxu0 0.0
  %628 = vmatpush1.msra.mxu0 0.0
  %629 = vmatprep.subr.mxu0 0.0
  %630 = vmatpush1.msra.mxu0 0.0
  %631 = vmatprep.subr.mxu0 0.0
  %632 = vmatpush1.msra.mxu0 0.0
  %633 = vmatprep.subr.mxu0 0.0
  %634 = vmatpush1.msra.mxu0 0.0
  %635 = vmatprep.subr.mxu0 0.0
  %636 = vmatpush1.msra.mxu0 0.0
  %637 = vmatprep.subr.mxu0 0.0
  %638 = vmatpush1.msra.mxu0 0.0
  %639 = vmatprep.subr.mxu0 0.0
  %640 = vmatpush1.msra.mxu0 0.0
  %641 = vmatprep.subr.mxu0 0.0
  %642 = vmatpush1.msra.mxu0 0.0
  %643 = vmatprep.subr.mxu0 0.0
  %644 = vmatpush1.msra.mxu0 0.0
  %645 = vmatprep.subr.mxu0 0.0
  %646 = vmatpush1.msra.mxu0 0.0
  %647 = vmatprep.subr.mxu0 0.0
  %648 = vmatpush1.msra.mxu0 0.0
  %649 = vmatprep.subr.mxu0 0.0
  %650 = vmatpush1.msra.mxu0 0.0
  %651 = vmatprep.subr.mxu0 0.0
  %652 = vmatpush1.msra.mxu0 0.0
  %653 = vmatprep.subr.mxu0 0.0
  %654 = vmatpush1.msra.mxu0 0.0
  %655 = vmatprep.subr.mxu0 0.0
  %656 = vmatpush1.msra.mxu0 0.0
  %657 = vmatprep.subr.mxu0 0.0
  %658 = vmatpush1.msra.mxu0 0.0
  %659 = vmatprep.subr.mxu0 0.0
  %660 = vmatpush1.msra.mxu0 0.0
  %661 = vmatprep.subr.mxu0 0.0
  %662 = vmatpush1.msra.mxu0 0.0
  %663 = vmatprep.subr.mxu0 0.0
  %664 = vmatpush1.msra.mxu0 0.0
  %665 = vmatprep.subr.mxu0 0.0
  %666 = vmatpush1.msra.mxu0 0.0
  %667 = vmatprep.subr.mxu0 0.0
  %668 = vmatpush1.msra.mxu0 0.0
  %669 = vmatprep.subr.mxu0 0.0
  %670 = vmatpush1.msra.mxu0 0.0
  %671 = vmatprep.subr.mxu0 0.0
  %672 = vmatpush1.msra.mxu0 0.0
  %673 = vmatprep.mubr.f32.mxu0 0.0
  %674 = vmatmul.mubr.f32.gmra.mrb[0].mxu0 %v607
  %v675 = vpop.f32.mrb[0].mxu0
  %v676 = vadd.f32 %v589, %v675
  %v677 = vpop.f32.mrb[0].mxu0
  %v678 = vadd.f32 %v593, %v677
  %679 = vdwg.mxu0
  %680 = vmatprep.subr.mxu0 %v571
  %681 = vmatpush1.msra.mxu0 %v570
  %682 = vmatprep.subr.mxu0 %v575
  %683 = vmatpush1.msra.mxu0 %v574
  %684 = vmatprep.subr.mxu0 %v579
  %685 = vmatpush1.msra.mxu0 %v578
  %686 = vmatprep.subr.mxu0 %v583
  %687 = vmatpush1.msra.mxu0 %v582
  %688 = vmatprep.subr.mxu0 0.0
  %689 = vmatpush1.msra.mxu0 0.0
  %690 = vmatprep.subr.mxu0 0.0
  %691 = vmatpush1.msra.mxu0 0.0
  %692 = vmatprep.subr.mxu0 0.0
  %693 = vmatpush1.msra.mxu0 0.0
  %694 = vmatprep.subr.mxu0 0.0
  %695 = vmatpush1.msra.mxu0 0.0
  %696 = vmatprep.subr.mxu0 0.0
  %697 = vmatpush1.msra.mxu0 0.0
  %698 = vmatprep.subr.mxu0 0.0
  %699 = vmatpush1.msra.mxu0 0.0
  %700 = vmatprep.subr.mxu0 0.0
  %701 = vmatpush1.msra.mxu0 0.0
  %702 = vmatprep.subr.mxu0 0.0
  %703 = vmatpush1.msra.mxu0 0.0
  %704 = vmatprep.subr.mxu0 0.0
  %705 = vmatpush1.msra.mxu0 0.0
  %706 = vmatprep.subr.mxu0 0.0
  %707 = vmatpush1.msra.mxu0 0.0
  %708 = vmatprep.subr.mxu0 0.0
  %709 = vmatpush1.msra.mxu0 0.0
  %710 = vmatprep.subr.mxu0 0.0
  %711 = vmatpush1.msra.mxu0 0.0
  %712 = vmatprep.subr.mxu0 0.0
  %713 = vmatpush1.msra.mxu0 0.0
  %714 = vmatprep.subr.mxu0 0.0
  %715 = vmatpush1.msra.mxu0 0.0
  %716 = vmatprep.subr.mxu0 0.0
  %717 = vmatpush1.msra.mxu0 0.0
  %718 = vmatprep.subr.mxu0 0.0
  %719 = vmatpush1.msra.mxu0 0.0
  %720 = vmatprep.subr.mxu0 0.0
  %721 = vmatpush1.msra.mxu0 0.0
  %722 = vmatprep.subr.mxu0 0.0
  %723 = vmatpush1.msra.mxu0 0.0
  %724 = vmatprep.subr.mxu0 0.0
  %725 = vmatpush1.msra.mxu0 0.0
  %726 = vmatprep.subr.mxu0 0.0
  %727 = vmatpush1.msra.mxu0 0.0
  %728 = vmatprep.subr.mxu0 0.0
  %729 = vmatpush1.msra.mxu0 0.0
  %730 = vmatprep.subr.mxu0 0.0
  %731 = vmatpush1.msra.mxu0 0.0
  %732 = vmatprep.subr.mxu0 0.0
  %733 = vmatpush1.msra.mxu0 0.0
  %734 = vmatprep.subr.mxu0 0.0
  %735 = vmatpush1.msra.mxu0 0.0
  %736 = vmatprep.subr.mxu0 0.0
  %737 = vmatpush1.msra.mxu0 0.0
  %738 = vmatprep.subr.mxu0 0.0
  %739 = vmatpush1.msra.mxu0 0.0
  %740 = vmatprep.subr.mxu0 0.0
  %741 = vmatpush1.msra.mxu0 0.0
  %742 = vmatprep.subr.mxu0 0.0
  %743 = vmatpush1.msra.mxu0 0.0
  %744 = vmatprep.mubr.f32.mxu0 0.0
  %745 = vmatmul.mubr.f32.gmra.mrb[0].mxu0 %v607
  %v746 = vpop.f32.mrb[0].mxu0
  %v747 = vadd.f32 %v597, %v746
  %v748 = vpop.f32.mrb[0].mxu0
  %v749 = vadd.f32 %v601, %v748
  %750 = vdwg.mxu0
  %v755 = vcombine.low %v676, %v678
  %v756 = vcombine.low %v747, %v749
  %v758 = vunpack.c.l.s4 1983009808
  %v759 = vunpack.c.0.s8 %v758
  %v760 = vlaneseq
  %v761 = vshrl.u32 %v760, 7
  %v762 = vsub.s32 %v759, %v761
  %v763 = vrot.slane %v755, %v762
  %v765 = vunpack.c.l.s4 1983009808
  %v766 = vunpack.c.0.s8 %v765
  %v767 = vlaneseq
  %v768 = vshrl.u32 %v767, 7
  %v769 = vsub.s32 %v766, %v768
  %v770 = vrot.slane %v756, %v769
  %v771 = vcombine.low %v763, %v770
  %773 = vst [vmem:[%s15] sm:$0xff] %v771
  %v774 = vsub.f32 %v46, %v676
  %v775 = vsub.f32 %v47, %v678
  %v776 = vmul.f32 %v774, %v774
  %v777 = vmul.f32 %v775, %v775
  %v778 = vsub.f32 0.0, %v747
  %v779 = vsub.f32 0.0, %v749
  %v780 = vmul.f32 %v778, 1.442695
  %v781 = vpow.pop %v780
  %v782 = vmul.f32 %v779, 1.442695
  %v783 = vpow.pop %v782
  %v784 = vmul.f32 %v776, %v781
  %v785 = vmul.f32 %v777, %v783
  %v786 = vadd.f32 %v747, %v784
  %v787 = vadd.f32 %v749, %v785
  %v788 = vadd.f32 %v786, 1.837877
  %v789 = vadd.f32 %v787, 1.837877
  %v790 = vmul.f32 %v788, 0.5
  %v791 = vmul.f32 %v789, 0.5
  %vm792 = vcmask 1041408
  %v793 = vsel %vm792, %v790, 0.0
  %v794 = vsel %vm792, %v791, 0.0
  %v795 = vadd.f32 %v793, %v794
  %796 = vadd.xlane.f32.xlu0 %v795
  %v797 = vpop.xlane.xlu0 %796
  %v798 = vmul.f32 %v240, %v240
  %v799 = vsel %vm484, %v798, 0.0
  %800 = vadd.xlane.f32.xlu0 %v799
  %v801 = vpop.xlane.xlu0 %800
  %v802 = vmul.f32 %v801, 0.5
  %v803 = vadd.f32 %v802, 28.921362
  %v804 = vsub.f32 %v245, %v483
  %v805 = vmul.f32 %v804, %v804
  %v806 = vsel %vm484, %v805, 0.0
  %807 = vadd.xlane.f32.xlu0 %v806
  %v808 = vpop.xlane.xlu0 %807
  %v809 = vlaneseq
  %v810 = vand.u32 %v809, 127
  %vm811 = vcmp.eq.s32.totalorder %v810, 0
  %vm812 = vcmp.eq.s32.totalorder %v810, 1
  %vm813 = vcmp.eq.s32.totalorder %v810, 2
  %v814 = vsel %vm813, %v808, 0.0
  %v815 = vsel %vm812, %v803, %v814
  %v816 = vsel %vm811, %v797, %v815
  %817 = vst [vmem:[%s16] sm:$0x3] %v816
  // Predicated region
  $region50: #{forward.1} parent=0 // pred_check
    _
  $region51: #{forward.1} parent=0 // pred_check_branch
    %819 = sbr.rel (0) target = $region53
  $region52: #{forward.1} parent=0 // pred_region
    _
  $region53: #{forward.1} parent=0 // pred_fallthru
    _
  // Predicated region
  $region54: #{forward.1} parent=0 // pred_check
    _
  $region55: #{forward.1} parent=0 // pred_check_branch
    %821 = sbr.rel (0) target = $region57
  $region56: #{forward.1} parent=0 // pred_region
    _
  $region57: #{forward.1} parent=0 // pred_fallthru
    _
  // Predicated region
  $region58: #{forward.1} parent=0 // pred_check
    _
  $region59: #{forward.1} parent=0 // pred_check_branch
    %823 = sbr.rel (0) target = $region61
  $region60: #{forward.1} parent=0 // pred_region
    _
  $region61: #{forward.1} parent=0 // pred_fallthru
    _
  // Predicated region
  $region62: #{forward.1} parent=0 // pred_check
    _
  $region63: #{forward.1} parent=0 // pred_check_branch
    %825 = sbr.rel (0) target = $region65
  $region64: #{forward.1} parent=0 // pred_region
    _
  $region65: #{forward.1} parent=0 // pred_fallthru
    _
  // Predicated region
  $region66: #{forward.1} parent=0 // pred_check
    _
  $region67: #{forward.1} parent=0 // pred_check_branch
    %827 = sbr.rel (0) target = $region69
  $region68: #{forward.1} parent=0 // pred_region
    _
  $region69: #{forward.1} parent=0 // pred_fallthru
    _
  // Predicated region
  $region70: #{forward.1} parent=0 // pred_check
    _
  $region71: #{forward.1} parent=0 // pred_check_branch
    %829 = sbr.rel (0) target = $region73
  $region72: #{forward.1} parent=0 // pred_region
    _
  $region73: #{forward.1} parent=0 // pred_fallthru
    _
  // Predicated region
  $region74: #{forward.1} parent=0 // pred_check
    _
  $region75: #{forward.1} parent=0 // pred_check_branch
    %831 = sbr.rel (0) target = $region77
  $region76: #{forward.1} parent=0 // pred_region
    _
  $region77: #{forward.1} parent=0 // pred_fallthru
    _
  // Predicated region
  $region78: #{forward.1} parent=0 // pred_check
    _
  $region79: #{forward.1} parent=0 // pred_check_branch
    %833 = sbr.rel (0) target = $region81
  $region80: #{forward.1} parent=0 // pred_region
    _
  $region81: #{forward.1} parent=0 // pred_fallthru
    _
  // Predicated region
  $region82: #{forward.1} parent=0 // pred_check
    _
  $region83: #{forward.1} parent=0 // pred_check_branch
    %835 = sbr.rel (0) target = $region85
  $region84: #{forward.1} parent=0 // pred_region
    _
  $region85: #{forward.1} parent=0 // pred_fallthru
    _
  // Predicated region
  $region86: #{forward.1} parent=0 // pred_check
    _
  $region87: #{forward.1} parent=0 // pred_check_branch
    %837 = sbr.rel (0) target = $region89
  $region88: #{forward.1} parent=0 // pred_region
    _
  $region89: #{forward.1} parent=0 // pred_fallthru
    _

</llo_original>
